<compile_context>
chip_gen: v5e
topology: v5e:2x2
jax: 0.10.0
libtpu: 0.0.40
codegen_flags: <defaults>
</compile_context>

<pallas_src>
import functools

import jax
import jax.numpy as jnp
from jax.experimental import pallas as pl
from jax.experimental.pallas import tpu as pltpu


def _round_up(x, m):
    return ((x + m - 1) // m) * m


def _cdiv(a, b):
    return -(-a // b)


def grn_kernel(xc_ref, wa_ref, ba_ref, w2_ref, b2_ref, w34_ref, b34_ref,
               gamma_ref, beta_ref, out_ref, *,
               hidden_padded, out_padded, out_features):
    compute_dtype = wa_ref.dtype

    xc = xc_ref[...]                                     # [rows, D_in + D_ctx]

    # Fused matmul A: one MXU pass -> [hidden_pre | skip] (biases folded via ba).
    hs = jnp.dot(xc, wa_ref[...], preferred_element_type=jnp.float32) + ba_ref[...]
    hidden = hs[:, :hidden_padded]
    skip = hs[:, hidden_padded:]

    # ELU (alpha = 1); exp of min(h, 0) avoids transient inf for large positives.
    hidden = jnp.where(hidden > 0.0, hidden,
                       jnp.exp(jnp.minimum(hidden, 0.0)) - 1.0)

    # fc2
    hidden = jnp.dot(hidden.astype(compute_dtype), w2_ref[...],
                     preferred_element_type=jnp.float32) + b2_ref[...]
    # TODO(synk): nn.Dropout is identity in eval mode; training-mode dropout not implemented.

    # Fused matmul C: one MXU pass -> [fc3_out | fc4_out].
    o34 = jnp.dot(hidden.astype(compute_dtype), w34_ref[...],
                  preferred_element_type=jnp.float32) + b34_ref[...]
    fc3 = o34[:, :out_padded]
    gate = jax.nn.sigmoid(o34[:, out_padded:])
    out = gate * fc3 + skip

    # LayerNorm over the *real* feature count only (padded lanes masked out).
    lane = jax.lax.broadcasted_iota(jnp.int32, out.shape, 1)
    mask = lane < out_features
    inv_n = 1.0 / out_features
    mean = jnp.sum(jnp.where(mask, out, 0.0), axis=-1, keepdims=True) * inv_n
    diff = jnp.where(mask, out - mean, 0.0)
    var = jnp.sum(diff * diff, axis=-1, keepdims=True) * inv_n
    normed = diff * jax.lax.rsqrt(var + 1e-5)
    out_ref[...] = (normed * gamma_ref[...] + beta_ref[...]).astype(out_ref.dtype)


def _prepare_params(params, compute_dtype):
    """Fuse, zero-pad to lane-dense (multiples of 128) and cast the weights."""
    (wskip, bskip, w1, b1, wc, w2, b2, w3, b3, w4, b4, gamma, beta) = params
    d_in, hidden = w1.shape
    d_ctx = wc.shape[0]
    d_out = w3.shape[1]
    hp = _round_up(hidden, 128)
    dp = _round_up(d_out, 128)
    f32 = jnp.float32

    # A: [x | ctx] @ [[W1, Wskip], [Wc, 0]] -> [hidden_pre | skip]
    wa = jnp.zeros((d_in + d_ctx, hp + dp), f32)
    wa = wa.at[:d_in, :hidden].set(w1)
    wa = wa.at[d_in:, :hidden].set(wc)
    wa = wa.at[:d_in, hp:hp + d_out].set(wskip)
    ba = jnp.zeros((1, hp + dp), f32)
    ba = ba.at[:, :hidden].set(b1)
    ba = ba.at[:, hp:hp + d_out].set(bskip)

    w2p = jnp.zeros((hp, hp), f32).at[:hidden, :hidden].set(w2)
    b2p = jnp.zeros((1, hp), f32).at[:, :hidden].set(b2)

    # C: hidden @ [W3 | W4] -> [fc3 | fc4]
    w34 = jnp.zeros((hp, 2 * dp), f32)
    w34 = w34.at[:hidden, :d_out].set(w3)
    w34 = w34.at[:hidden, dp:dp + d_out].set(w4)
    b34 = jnp.zeros((1, 2 * dp), f32)
    b34 = b34.at[:, :d_out].set(b3)
    b34 = b34.at[:, dp:dp + d_out].set(b4)

    gp = jnp.zeros((1, dp), f32).at[:, :d_out].set(gamma)
    bp = jnp.zeros((1, dp), f32).at[:, :d_out].set(beta)

    prepared = (wa.astype(compute_dtype), ba,
                w2p.astype(compute_dtype), b2p,
                w34.astype(compute_dtype), b34,
                gp, bp)
    dims = (d_in, d_ctx, hidden, d_out, hp, dp)
    return prepared, dims


def _choose_row_tile(n, requested):
    if requested is not None:
        return requested
    t = min(512, _round_up(n, 8))
    # Keep >= 2 grid steps when possible so v7x's two TensorCores both get work.
    if _cdiv(n, t) < 2 and t > 8:
        t = max(8, _round_up(_cdiv(n, 2), 8))
    return t


@functools.partial(jax.jit, static_argnames=("compute_dtype", "row_tile"))
def gated_residual_network(x, context, params, *,
                           compute_dtype=jnp.bfloat16, row_tile=None):
    """x: [B, T, D_in], context: [B, T, D_ctx] -> [B, T, D_out]."""
    B, T, d_in = x.shape
    d_ctx = context.shape[-1]
    n = B * T

    prepared, dims = _prepare_params(params, compute_dtype)
    wa, ba, w2p, b2p, w34, b34, gp, bp = prepared
    _, _, hidden, d_out, hp, dp = dims
    ka = d_in + d_ctx

    tile = _choose_row_tile(n, row_tile)
    n_pad = _round_up(n, tile)
    grid = (n_pad // tile,)

    xc = jnp.concatenate([x.reshape(n, d_in), context.reshape(n, d_ctx)], axis=-1)
    if n_pad != n:
        xc = jnp.pad(xc, ((0, n_pad - n), (0, 0)))
    xc = xc.astype(compute_dtype)

    def row_spec(ncols):
        return pl.BlockSpec((tile, ncols), lambda i: (i, 0))

    def full_spec(shape):
        # Invariant weights/biases: constant index_map -> fetched once, never
        # re-DMA'd across grid steps.
        # TODO(synk): at production sizes also use pipeline_mode=pl.Buffered(1)
        # (or a one-shot copy into scratch VMEM) to drop the 2x buffer allocation.
        return pl.BlockSpec(shape, lambda i: (0,) * len(shape))

    flops = 2 * n_pad * (ka * (hp + dp) + hp * hp + hp * 2 * dp)
    transcendentals = n_pad * (hp + dp)          # ELU exp + sigmoid
    weight_bytes = sum(int(a.size) * a.dtype.itemsize for a in prepared)
    bytes_accessed = (int(xc.size) * xc.dtype.itemsize
                      + n_pad * dp * x.dtype.itemsize
                      + weight_bytes)

    out2d = pl.pallas_call(
        functools.partial(grn_kernel, hidden_padded=hp, out_padded=dp,
                          out_features=d_out),
        out_shape=jax.ShapeDtypeStruct((n_pad, dp), x.dtype),
        grid_spec=pltpu.PrefetchScalarGridSpec(
            num_scalar_prefetch=0,
            grid=grid,
            in_specs=[
                row_spec(ka),                       # [x | ctx] tile
                full_spec(wa.shape), full_spec(ba.shape),
                full_spec(w2p.shape), full_spec(b2p.shape),
                full_spec(w34.shape), full_spec(b34.shape),
                full_spec(gp.shape), full_spec(bp.shape),
            ],
            out_specs=row_spec(dp),                 # lane-dense (multiple of 128)
        ),
        compiler_params=pltpu.CompilerParams(
            dimension_semantics=("parallel",),
            vmem_limit_bytes=48 * 1024 * 1024,      # explicit; headroom under v7x 64 MiB
        ),
        cost_estimate=pl.CostEstimate(
            flops=flops,
            transcendentals=transcendentals,
            bytes_accessed=bytes_accessed,
        ),
    )(xc, wa, ba, w2p, b2p, w34, b34, gp, bp)

    return out2d[:n, :d_out].reshape(B, T, d_out)


def init_params(key, input_size, hidden_size, output_size, context_size):
    """Deterministic synthetic parameter init (Linear weights stored (in, out))."""
    ks = jax.random.split(key, 11)

    def lin_w(k, din, dout):
        s = 1.0 / (din ** 0.5)
        return jax.random.uniform(k, (din, dout), jnp.float32, -s, s)

    wskip = lin_w(ks[0], input_size, output_size)
    bskip = jax.random.uniform(ks[1], (1, output_size), jnp.float32, -0.1, 0.1)
    w1 = lin_w(ks[2], input_size, hidden_size)
    b1 = jax.random.uniform(ks[3], (1, hidden_size), jnp.float32, -0.1, 0.1)
    wc = lin_w(ks[4], context_size, hidden_size)          # context layer: no bias
    w2 = lin_w(ks[5], hidden_size, hidden_size)
    b2 = jax.random.uniform(ks[6], (1, hidden_size), jnp.float32, -0.1, 0.1)
    w3 = lin_w(ks[7], hidden_size, output_size)
    b3 = jax.random.uniform(ks[8], (1, output_size), jnp.float32, -0.1, 0.1)
    w4 = lin_w(ks[9], hidden_size, output_size)
    b4 = jax.random.uniform(ks[10], (1, output_size), jnp.float32, -0.1, 0.1)
    gamma = jnp.ones((1, output_size), jnp.float32)        # LayerNorm default init
    beta = jnp.zeros((1, output_size), jnp.float32)
    return (wskip, bskip, w1, b1, wc, w2, b2, w3, b3, w4, b4, gamma, beta)


def grn_reference(x, context, params, compute_dtype=jnp.float32):
    """Pure-JAX reference (module semantics); optional operand cast to mirror bf16 path."""
    (wskip, bskip, w1, b1, wc, w2, b2, w3, b3, w4, b4, gamma, beta) = params

    def mm(a, w):
        return jnp.dot(a.astype(compute_dtype), w.astype(compute_dtype),
                       preferred_element_type=jnp.float32)

    skip = mm(x, wskip) + bskip[0]
    hidden = mm(x, w1) + b1[0] + mm(context, wc)
    hidden = jnp.where(hidden > 0, hidden, jnp.exp(jnp.minimum(hidden, 0.0)) - 1.0)
    hidden = mm(hidden, w2) + b2[0]
    gate = jax.nn.sigmoid(mm(hidden, w4) + b4[0])
    out = gate * (mm(hidden, w3) + b3[0]) + skip
    mean = jnp.mean(out, axis=-1, keepdims=True)
    var = jnp.mean((out - mean) ** 2, axis=-1, keepdims=True)
    return (out - mean) * jax.lax.rsqrt(var + 1e-5) * gamma[0] + beta[0]


if __name__ == "__main__":
    # Small shapes consistent with the module.
    B, T = 2, 8
    input_size, hidden_size, output_size, context_size = 16, 32, 24, 8

    key = jax.random.PRNGKey(0)
    kx, kc, kp = jax.random.split(key, 3)
    x = jax.random.normal(kx, (B, T, input_size), jnp.float32)
    context = jax.random.normal(kc, (B, T, context_size), jnp.float32)
    params = init_params(kp, input_size, hidden_size, output_size, context_size)

    # Strict check: f32 matmul path vs. pure-JAX f32 reference.
    out_f32 = jax.block_until_ready(
        gated_residual_network(x, context, params, compute_dtype=jnp.float32))
    ref_f32 = grn_reference(x, context, params, compute_dtype=jnp.float32)
    assert out_f32.shape == (B, T, output_size)
    assert jnp.allclose(out_f32, ref_f32, atol=1e-4, rtol=1e-4), "f32 mismatch vs reference"

    # Default bf16-weight path vs. a reference using the same bf16-cast operands.
    out_bf16 = jax.block_until_ready(gated_residual_network(x, context, params))
    ref_bf16 = grn_reference(x, context, params, compute_dtype=jnp.bfloat16)
    assert jnp.allclose(out_bf16, ref_bf16, atol=5e-3, rtol=5e-3), "bf16 mismatch vs reference"

    print("KERNEL_OK")
</pallas_src>

<mosaic_0001>
module attributes {stable_mosaic.version = 11 : i64} {
  func.func @grn_kernel(%arg0: i32, %arg1: memref<8x24xf32, #tpu.memory_space<vmem>>, %arg2: memref<24x256xf32, #tpu.memory_space<vmem>>, %arg3: memref<1x256xf32, #tpu.memory_space<vmem>>, %arg4: memref<128x128xf32, #tpu.memory_space<vmem>>, %arg5: memref<1x128xf32, #tpu.memory_space<vmem>>, %arg6: memref<128x256xf32, #tpu.memory_space<vmem>>, %arg7: memref<1x256xf32, #tpu.memory_space<vmem>>, %arg8: memref<1x128xf32, #tpu.memory_space<vmem>>, %arg9: memref<1x128xf32, #tpu.memory_space<vmem>>, %arg10: memref<8x128xf32, #tpu.memory_space<vmem>>) attributes {dimension_semantics = [#tpu.dimension_semantics<parallel>], iteration_bounds = array<i64: 2>, scalar_prefetch = 0 : i64, scratch_operands = 0 : i64, tpu.core_type = #tpu.core_type<tc>, window_params = [{transform_indices = @transform_0, window_bounds = array<i64: 8, 24>}, {pipeline_mode = #tpu.pipeline_mode<synchronous>, transform_indices = @transform_1, window_bounds = array<i64: 24, 256>}, {pipeline_mode = #tpu.pipeline_mode<synchronous>, transform_indices = @transform_2, window_bounds = array<i64: 1, 256>}, {pipeline_mode = #tpu.pipeline_mode<synchronous>, transform_indices = @transform_3, window_bounds = array<i64: 128, 128>}, {pipeline_mode = #tpu.pipeline_mode<synchronous>, transform_indices = @transform_4, window_bounds = array<i64: 1, 128>}, {pipeline_mode = #tpu.pipeline_mode<synchronous>, transform_indices = @transform_5, window_bounds = array<i64: 128, 256>}, {pipeline_mode = #tpu.pipeline_mode<synchronous>, transform_indices = @transform_6, window_bounds = array<i64: 1, 256>}, {pipeline_mode = #tpu.pipeline_mode<synchronous>, transform_indices = @transform_7, window_bounds = array<i64: 1, 128>}, {pipeline_mode = #tpu.pipeline_mode<synchronous>, transform_indices = @transform_8, window_bounds = array<i64: 1, 128>}, {transform_indices = @transform_9, window_bounds = array<i64: 8, 128>}]} {
    %c0 = arith.constant 0 : index
    %c0_0 = arith.constant 0 : index
    %0 = vector.load %arg1[%c0, %c0_0] : memref<8x24xf32, #tpu.memory_space<vmem>>, vector<8x24xf32>
    %c0_1 = arith.constant 0 : index
    %c0_2 = arith.constant 0 : index
    %1 = vector.load %arg2[%c0_1, %c0_2] : memref<24x256xf32, #tpu.memory_space<vmem>>, vector<24x256xf32>
    %cst = arith.constant dense<0.000000e+00> : vector<8x256xf32>
    %2 = tpu.matmul %0, %1, %cst {dimension_numbers = #tpu.dot_dimension_numbers<[1], [0], [0], [1], [0, 0, 1, 1], [], []>} : vector<8x24xf32>, vector<24x256xf32>, vector<8x256xf32> -> vector<8x256xf32>
    %c0_3 = arith.constant 0 : index
    %c0_4 = arith.constant 0 : index
    %3 = vector.load %arg3[%c0_3, %c0_4] : memref<1x256xf32, #tpu.memory_space<vmem>>, vector<1x256xf32>
    %4 = vector.broadcast %3 : vector<1x256xf32> to vector<8x256xf32>
    %5 = arith.addf %2, %4 : vector<8x256xf32>
    %6 = vector.extract_strided_slice %5 {offsets = [0, 0], sizes = [8, 128], strides = [1, 1]} : vector<8x256xf32> to vector<8x128xf32>
    %7 = vector.extract_strided_slice %5 {offsets = [0, 128], sizes = [8, 128], strides = [1, 1]} : vector<8x256xf32> to vector<8x128xf32>
    %cst_5 = arith.constant 0.000000e+00 : f32
    %8 = vector.broadcast %cst_5 : f32 to vector<8x128xf32>
    %9 = arith.cmpf ogt, %6, %8 : vector<8x128xf32>
    %cst_6 = arith.constant 0.000000e+00 : f32
    %10 = vector.broadcast %cst_6 : f32 to vector<8x128xf32>
    %11 = arith.minimumf %6, %10 : vector<8x128xf32>
    %12 = math.exp %11 : vector<8x128xf32>
    %cst_7 = arith.constant 1.000000e+00 : f32
    %13 = vector.broadcast %cst_7 : f32 to vector<8x128xf32>
    %14 = arith.subf %12, %13 : vector<8x128xf32>
    %15 = arith.select %9, %6, %14 : vector<8x128xi1>, vector<8x128xf32>
    %c0_8 = arith.constant 0 : index
    %c0_9 = arith.constant 0 : index
    %16 = vector.load %arg4[%c0_8, %c0_9] : memref<128x128xf32, #tpu.memory_space<vmem>>, vector<128x128xf32>
    %cst_10 = arith.constant dense<0.000000e+00> : vector<8x128xf32>
    %17 = tpu.matmul %15, %16, %cst_10 {dimension_numbers = #tpu.dot_dimension_numbers<[1], [0], [0], [1], [0, 0, 1, 1], [], []>} : vector<8x128xf32>, vector<128x128xf32>, vector<8x128xf32> -> vector<8x128xf32>
    %c0_11 = arith.constant 0 : index
    %c0_12 = arith.constant 0 : index
    %18 = vector.load %arg5[%c0_11, %c0_12] : memref<1x128xf32, #tpu.memory_space<vmem>>, vector<1x128xf32>
    %19 = vector.broadcast %18 : vector<1x128xf32> to vector<8x128xf32>
    %20 = arith.addf %17, %19 : vector<8x128xf32>
    %c0_13 = arith.constant 0 : index
    %c0_14 = arith.constant 0 : index
    %21 = vector.load %arg6[%c0_13, %c0_14] : memref<128x256xf32, #tpu.memory_space<vmem>>, vector<128x256xf32>
    %cst_15 = arith.constant dense<0.000000e+00> : vector<8x256xf32>
    %22 = tpu.matmul %20, %21, %cst_15 {dimension_numbers = #tpu.dot_dimension_numbers<[1], [0], [0], [1], [0, 0, 1, 1], [], []>} : vector<8x128xf32>, vector<128x256xf32>, vector<8x256xf32> -> vector<8x256xf32>
    %c0_16 = arith.constant 0 : index
    %c0_17 = arith.constant 0 : index
    %23 = vector.load %arg7[%c0_16, %c0_17] : memref<1x256xf32, #tpu.memory_space<vmem>>, vector<1x256xf32>
    %24 = vector.broadcast %23 : vector<1x256xf32> to vector<8x256xf32>
    %25 = arith.addf %22, %24 : vector<8x256xf32>
    %26 = vector.extract_strided_slice %25 {offsets = [0, 0], sizes = [8, 128], strides = [1, 1]} : vector<8x256xf32> to vector<8x128xf32>
    %27 = vector.extract_strided_slice %25 {offsets = [0, 128], sizes = [8, 128], strides = [1, 1]} : vector<8x256xf32> to vector<8x128xf32>
    %28 = arith.negf %27 : vector<8x128xf32>
    %29 = math.exp %28 : vector<8x128xf32>
    %cst_18 = arith.constant 1.000000e+00 : f32
    %30 = vector.broadcast %cst_18 : f32 to vector<8x128xf32>
    %31 = arith.addf %30, %29 : vector<8x128xf32>
    %32 = arith.divf %30, %31 : vector<8x128xf32>
    %33 = arith.mulf %32, %26 : vector<8x128xf32>
    %34 = arith.addf %33, %7 : vector<8x128xf32>
    %35 = tpu.iota {dimensions = array<i32: 1>} : vector<8x128xi32>
    %c24_i32 = arith.constant 24 : i32
    %36 = vector.broadcast %c24_i32 : i32 to vector<8x128xi32>
    %37 = arith.cmpi slt, %35, %36 : vector<8x128xi32>
    %cst_19 = arith.constant 0.000000e+00 : f32
    %38 = vector.broadcast %cst_19 : f32 to vector<8x128xf32>
    %39 = arith.select %37, %34, %38 : vector<8x128xi1>, vector<8x128xf32>
    %cst_20 = arith.constant dense<0.000000e+00> : vector<8xf32>
    %40 = vector.multi_reduction <add>, %39, %cst_20 [1] : vector<8x128xf32> to vector<8xf32>
    %41 = vector.shape_cast %40 : vector<8xf32> to vector<8x1xf32>
    %cst_21 = arith.constant 0.0416666679 : f32
    %42 = vector.broadcast %cst_21 : f32 to vector<8x1xf32>
    %43 = arith.mulf %41, %42 : vector<8x1xf32>
    %44 = vector.broadcast %43 : vector<8x1xf32> to vector<8x128xf32>
    %45 = arith.subf %34, %44 : vector<8x128xf32>
    %cst_22 = arith.constant 0.000000e+00 : f32
    %46 = vector.broadcast %cst_22 : f32 to vector<8x128xf32>
    %47 = arith.select %37, %45, %46 : vector<8x128xi1>, vector<8x128xf32>
    %48 = arith.mulf %47, %47 : vector<8x128xf32>
    %cst_23 = arith.constant dense<0.000000e+00> : vector<8xf32>
    %49 = vector.multi_reduction <add>, %48, %cst_23 [1] : vector<8x128xf32> to vector<8xf32>
    %50 = vector.shape_cast %49 : vector<8xf32> to vector<8x1xf32>
    %cst_24 = arith.constant 0.0416666679 : f32
    %51 = vector.broadcast %cst_24 : f32 to vector<8x1xf32>
    %52 = arith.mulf %50, %51 : vector<8x1xf32>
    %cst_25 = arith.constant 9.99999974E-6 : f32
    %53 = vector.broadcast %cst_25 : f32 to vector<8x1xf32>
    %54 = arith.addf %52, %53 : vector<8x1xf32>
    %55 = math.rsqrt %54 : vector<8x1xf32>
    %56 = vector.broadcast %55 : vector<8x1xf32> to vector<8x128xf32>
    %57 = arith.mulf %47, %56 : vector<8x128xf32>
    %c0_26 = arith.constant 0 : index
    %c0_27 = arith.constant 0 : index
    %58 = vector.load %arg8[%c0_26, %c0_27] : memref<1x128xf32, #tpu.memory_space<vmem>>, vector<1x128xf32>
    %59 = vector.broadcast %58 : vector<1x128xf32> to vector<8x128xf32>
    %60 = arith.mulf %57, %59 : vector<8x128xf32>
    %c0_28 = arith.constant 0 : index
    %c0_29 = arith.constant 0 : index
    %61 = vector.load %arg9[%c0_28, %c0_29] : memref<1x128xf32, #tpu.memory_space<vmem>>, vector<1x128xf32>
    %62 = vector.broadcast %61 : vector<1x128xf32> to vector<8x128xf32>
    %63 = arith.addf %60, %62 : vector<8x128xf32>
    %c0_30 = arith.constant 0 : index
    %c0_31 = arith.constant 0 : index
    %64 = vector.load %arg10[%c0_30, %c0_31] : memref<8x128xf32, #tpu.memory_space<vmem>>, vector<8x128xf32>
    tpu.vector_store %arg10[%c0_30, %c0_31], %63 {strides = array<i32>} : memref<8x128xf32, #tpu.memory_space<vmem>>, vector<8x128xf32>,
    return
  }
  func.func @transform_0(%arg0: i32) -> (i32, i32) {
    %c0_i32 = arith.constant 0 : i32
    %c0_i32_0 = arith.constant 0 : i32
    return %arg0, %c0_i32 : i32, i32
  }
  func.func @transform_1(%arg0: i32) -> (i32, i32) {
    %c0_i32 = arith.constant 0 : i32
    %c0_i32_0 = arith.constant 0 : i32
    %c0_i32_1 = arith.constant 0 : i32
    return %c0_i32, %c0_i32_0 : i32, i32
  }
  func.func @transform_2(%arg0: i32) -> (i32, i32) {
    %c0_i32 = arith.constant 0 : i32
    %c0_i32_0 = arith.constant 0 : i32
    %c0_i32_1 = arith.constant 0 : i32
    return %c0_i32, %c0_i32_0 : i32, i32
  }
  func.func @transform_3(%arg0: i32) -> (i32, i32) {
    %c0_i32 = arith.constant 0 : i32
    %c0_i32_0 = arith.constant 0 : i32
    %c0_i32_1 = arith.constant 0 : i32
    return %c0_i32, %c0_i32_0 : i32, i32
  }
  func.func @transform_4(%arg0: i32) -> (i32, i32) {
    %c0_i32 = arith.constant 0 : i32
    %c0_i32_0 = arith.constant 0 : i32
    %c0_i32_1 = arith.constant 0 : i32
    return %c0_i32, %c0_i32_0 : i32, i32
  }
  func.func @transform_5(%arg0: i32) -> (i32, i32) {
    %c0_i32 = arith.constant 0 : i32
    %c0_i32_0 = arith.constant 0 : i32
    %c0_i32_1 = arith.constant 0 : i32
    return %c0_i32, %c0_i32_0 : i32, i32
  }
  func.func @transform_6(%arg0: i32) -> (i32, i32) {
    %c0_i32 = arith.constant 0 : i32
    %c0_i32_0 = arith.constant 0 : i32
    %c0_i32_1 = arith.constant 0 : i32
    return %c0_i32, %c0_i32_0 : i32, i32
  }
  func.func @transform_7(%arg0: i32) -> (i32, i32) {
    %c0_i32 = arith.constant 0 : i32
    %c0_i32_0 = arith.constant 0 : i32
    %c0_i32_1 = arith.constant 0 : i32
    return %c0_i32, %c0_i32_0 : i32, i32
  }
  func.func @transform_8(%arg0: i32) -> (i32, i32) {
    %c0_i32 = arith.constant 0 : i32
    %c0_i32_0 = arith.constant 0 : i32
    %c0_i32_1 = arith.constant 0 : i32
    return %c0_i32, %c0_i32_0 : i32, i32
  }
  func.func @transform_9(%arg0: i32) -> (i32, i32) {
    %c0_i32 = arith.constant 0 : i32
    %c0_i32_0 = arith.constant 0 : i32
    return %arg0, %c0_i32 : i32, i32
  }
}

</mosaic_0001>

<llo_original>
// kernel: gated_residual_network.1
$region0: #{gated_residual_network.1}
  #allocation0 [shape = 'u32[]', space=smem, size = 0x4, offset = 0x4, fixed_abs, tag = 'smem constant byte address 0x4 - core index']
  #allocation1 [shape = 'u32[72,128]{1,0:T(1,128)}', space=vmem, size = 0x9000, scoped, tag = 'internal scratch']
  %s0 = inlined_call_operand.vmem [shape: f32[16,24], index: 0, kind: input, shape index: {}]
  %s1 = inlined_call_operand.vmem [shape: f32[24,256], index: 1, kind: input, shape index: {}]
  %s2 = inlined_call_operand.vmem [shape: f32[1,256], index: 2, kind: input, shape index: {}]
  %s3 = inlined_call_operand.vmem [shape: f32[128,128], index: 3, kind: input, shape index: {}]
  %s4 = inlined_call_operand.vmem [shape: f32[1,128], index: 4, kind: input, shape index: {}]
  %s5 = inlined_call_operand.vmem [shape: f32[128,256], index: 5, kind: input, shape index: {}]
  %s6 = inlined_call_operand.vmem [shape: f32[1,256], index: 6, kind: input, shape index: {}]
  %s7 = inlined_call_operand.vmem [shape: f32[1,128], index: 7, kind: input, shape index: {}]
  %s8 = inlined_call_operand.vmem [shape: f32[1,128], index: 8, kind: input, shape index: {}]
  %s9 = inlined_call_operand.vmem [shape: f32[16,128], index: 9, kind: output, shape index: {}]
  %s10 = sld [smem:[#allocation0]]
  $region69: #{gated_residual_network.1} parent=0
    _
  %s12 = ssub.s32 1, %s10
  %s13 = scalar_select 0, %s12, %s10
  loop: start=0, step=1, limit=4
  $region2: #{gated_residual_network.1} parent=0 // loop_pre_header
    _
  $region3: #{gated_residual_network.1} parent=0 // loop_header
    %s15 = sphi 0, %s19
    %p16 = scmp.ge.s32.totalorder %s15, 4
    %s25 = sphi 0, %s27
    %s28 = sphi 0, %s25
    %s29 = sphi 0, %s28
    %s45 = sphi 0, %s29
    %s49 = sphi 0, %s49
    %s51 = sphi 0, %s49
    %s52 = sphi 0, %s51
    %s66 = sphi 0, %s52
    %s70 = sphi 0, %s70
    %s72 = sphi 0, %s70
    %s73 = sphi 0, %s72
    %s87 = sphi 0, %s73
    %s91 = sphi 0, %s91
    %s93 = sphi 0, %s91
    %s94 = sphi 0, %s93
    %s108 = sphi 0, %s94
    %s112 = sphi 0, %s112
    %s114 = sphi 0, %s112
    %s115 = sphi 0, %s114
    %s129 = sphi 0, %s115
    %s133 = sphi 0, %s133
    %s135 = sphi 0, %s133
    %s136 = sphi 0, %s135
    %s150 = sphi 0, %s136
    %s154 = sphi 0, %s154
    %s156 = sphi 0, %s154
    %s157 = sphi 0, %s156
    %s171 = sphi 0, %s157
    %s175 = sphi 0, %s175
    %s177 = sphi 0, %s175
    %s178 = sphi 0, %s177
    %s192 = sphi 0, %s178
    %s196 = sphi 0, %s196
    %s198 = sphi 0, %s196
    %s199 = sphi 0, %s198
    %s213 = sphi 0, %s199
    %s219 = sphi 0, %s221
    %s222 = sphi 0, %s219
    %s223 = sphi 0, %s222
    %s239 = sphi 0, %s223
  $region4: #{gated_residual_network.1} parent=0 // loop_header_branch
    %18 = sbr.rel (%p16) target = $region8
  $region5: #{gated_residual_network.1} parent=0 // loop_body
    %s20 = ssub.s32 %s15, 1
    %s21 = ssub.s32 %s15, 2
    %s22 = sadd.s32 %s15, 1
    %s23 = ssub.s32 %s15, %s22
    %p24 = scmp.eq.s32.totalorder %s23, 0
    %s26 = sadd.s32 %s25, 1
    %s27 = scalar_select %p24, %s25, %s26
    %p30 = pneg %p24
    %p31 = scmp.eq.s32.totalorder %s15, 1
    %p32 = por %p30, %p31
    %p33 = scmp.ne.s32.totalorder %s25, %s28
    %p34 = scmp.eq.s32.totalorder %s15, 0
    %p35 = por %p33, %p34
    %p36 = scmp.ne.s32.totalorder %s25, %s28
    %p37 = scmp.eq.s32.totalorder %s20, 1
    %p38 = por %p36, %p37
    %p39 = scmp.ne.s32.totalorder %s28, %s29
    %p40 = scmp.eq.s32.totalorder %s20, 0
    %p41 = por %p39, %p40
    %p42 = scmp.ne.s32.totalorder %s28, %s29
    %p43 = scmp.eq.s32.totalorder %s21, 1
    %p44 = por %p42, %p43
    %p46 = scmp.ne.s32.totalorder %s29, %s45
    %p47 = scmp.eq.s32.totalorder %s21, 0
    %p48 = por %p46, %p47
    %s50 = sadd.s32 %s49, 1
    %p53 = scmp.eq.s32.totalorder %s15, 1
    %p54 = scmp.ne.s32.totalorder %s49, %s51
    %p55 = scmp.eq.s32.totalorder %s15, 0
    %p56 = por %p54, %p55
    %p57 = scmp.ne.s32.totalorder %s49, %s51
    %p58 = scmp.eq.s32.totalorder %s20, 1
    %p59 = por %p57, %p58
    %p60 = scmp.ne.s32.totalorder %s51, %s52
    %p61 = scmp.eq.s32.totalorder %s20, 0
    %p62 = por %p60, %p61
    %p63 = scmp.ne.s32.totalorder %s51, %s52
    %p64 = scmp.eq.s32.totalorder %s21, 1
    %p65 = por %p63, %p64
    %p67 = scmp.ne.s32.totalorder %s52, %s66
    %p68 = scmp.eq.s32.totalorder %s21, 0
    %p69 = por %p67, %p68
    %s71 = sadd.s32 %s70, 1
    %p74 = scmp.eq.s32.totalorder %s15, 1
    %p75 = scmp.ne.s32.totalorder %s70, %s72
    %p76 = scmp.eq.s32.totalorder %s15, 0
    %p77 = por %p75, %p76
    %p78 = scmp.ne.s32.totalorder %s70, %s72
    %p79 = scmp.eq.s32.totalorder %s20, 1
    %p80 = por %p78, %p79
    %p81 = scmp.ne.s32.totalorder %s72, %s73
    %p82 = scmp.eq.s32.totalorder %s20, 0
    %p83 = por %p81, %p82
    %p84 = scmp.ne.s32.totalorder %s72, %s73
    %p85 = scmp.eq.s32.totalorder %s21, 1
    %p86 = por %p84, %p85
    %p88 = scmp.ne.s32.totalorder %s73, %s87
    %p89 = scmp.eq.s32.totalorder %s21, 0
    %p90 = por %p88, %p89
    %s92 = sadd.s32 %s91, 1
    %p95 = scmp.eq.s32.totalorder %s15, 1
    %p96 = scmp.ne.s32.totalorder %s91, %s93
    %p97 = scmp.eq.s32.totalorder %s15, 0
    %p98 = por %p96, %p97
    %p99 = scmp.ne.s32.totalorder %s91, %s93
    %p100 = scmp.eq.s32.totalorder %s20, 1
    %p101 = por %p99, %p100
    %p102 = scmp.ne.s32.totalorder %s93, %s94
    %p103 = scmp.eq.s32.totalorder %s20, 0
    %p104 = por %p102, %p103
    %p105 = scmp.ne.s32.totalorder %s93, %s94
    %p106 = scmp.eq.s32.totalorder %s21, 1
    %p107 = por %p105, %p106
    %p109 = scmp.ne.s32.totalorder %s94, %s108
    %p110 = scmp.eq.s32.totalorder %s21, 0
    %p111 = por %p109, %p110
    %s113 = sadd.s32 %s112, 1
    %p116 = scmp.eq.s32.totalorder %s15, 1
    %p117 = scmp.ne.s32.totalorder %s112, %s114
    %p118 = scmp.eq.s32.totalorder %s15, 0
    %p119 = por %p117, %p118
    %p120 = scmp.ne.s32.totalorder %s112, %s114
    %p121 = scmp.eq.s32.totalorder %s20, 1
    %p122 = por %p120, %p121
    %p123 = scmp.ne.s32.totalorder %s114, %s115
    %p124 = scmp.eq.s32.totalorder %s20, 0
    %p125 = por %p123, %p124
    %p126 = scmp.ne.s32.totalorder %s114, %s115
    %p127 = scmp.eq.s32.totalorder %s21, 1
    %p128 = por %p126, %p127
    %p130 = scmp.ne.s32.totalorder %s115, %s129
    %p131 = scmp.eq.s32.totalorder %s21, 0
    %p132 = por %p130, %p131
    %s134 = sadd.s32 %s133, 1
    %p137 = scmp.eq.s32.totalorder %s15, 1
    %p138 = scmp.ne.s32.totalorder %s133, %s135
    %p139 = scmp.eq.s32.totalorder %s15, 0
    %p140 = por %p138, %p139
    %p141 = scmp.ne.s32.totalorder %s133, %s135
    %p142 = scmp.eq.s32.totalorder %s20, 1
    %p143 = por %p141, %p142
    %p144 = scmp.ne.s32.totalorder %s135, %s136
    %p145 = scmp.eq.s32.totalorder %s20, 0
    %p146 = por %p144, %p145
    %p147 = scmp.ne.s32.totalorder %s135, %s136
    %p148 = scmp.eq.s32.totalorder %s21, 1
    %p149 = por %p147, %p148
    %p151 = scmp.ne.s32.totalorder %s136, %s150
    %p152 = scmp.eq.s32.totalorder %s21, 0
    %p153 = por %p151, %p152
    %s155 = sadd.s32 %s154, 1
    %p158 = scmp.eq.s32.totalorder %s15, 1
    %p159 = scmp.ne.s32.totalorder %s154, %s156
    %p160 = scmp.eq.s32.totalorder %s15, 0
    %p161 = por %p159, %p160
    %p162 = scmp.ne.s32.totalorder %s154, %s156
    %p163 = scmp.eq.s32.totalorder %s20, 1
    %p164 = por %p162, %p163
    %p165 = scmp.ne.s32.totalorder %s156, %s157
    %p166 = scmp.eq.s32.totalorder %s20, 0
    %p167 = por %p165, %p166
    %p168 = scmp.ne.s32.totalorder %s156, %s157
    %p169 = scmp.eq.s32.totalorder %s21, 1
    %p170 = por %p168, %p169
    %p172 = scmp.ne.s32.totalorder %s157, %s171
    %p173 = scmp.eq.s32.totalorder %s21, 0
    %p174 = por %p172, %p173
    %s176 = sadd.s32 %s175, 1
    %p179 = scmp.eq.s32.totalorder %s15, 1
    %p180 = scmp.ne.s32.totalorder %s175, %s177
    %p181 = scmp.eq.s32.totalorder %s15, 0
    %p182 = por %p180, %p181
    %p183 = scmp.ne.s32.totalorder %s175, %s177
    %p184 = scmp.eq.s32.totalorder %s20, 1
    %p185 = por %p183, %p184
    %p186 = scmp.ne.s32.totalorder %s177, %s178
    %p187 = scmp.eq.s32.totalorder %s20, 0
    %p188 = por %p186, %p187
    %p189 = scmp.ne.s32.totalorder %s177, %s178
    %p190 = scmp.eq.s32.totalorder %s21, 1
    %p191 = por %p189, %p190
    %p193 = scmp.ne.s32.totalorder %s178, %s192
    %p194 = scmp.eq.s32.totalorder %s21, 0
    %p195 = por %p193, %p194
    %s197 = sadd.s32 %s196, 1
    %p200 = scmp.eq.s32.totalorder %s15, 1
    %p201 = scmp.ne.s32.totalorder %s196, %s198
    %p202 = scmp.eq.s32.totalorder %s15, 0
    %p203 = por %p201, %p202
    %p204 = scmp.ne.s32.totalorder %s196, %s198
    %p205 = scmp.eq.s32.totalorder %s20, 1
    %p206 = por %p204, %p205
    %p207 = scmp.ne.s32.totalorder %s198, %s199
    %p208 = scmp.eq.s32.totalorder %s20, 0
    %p209 = por %p207, %p208
    %p210 = scmp.ne.s32.totalorder %s198, %s199
    %p211 = scmp.eq.s32.totalorder %s21, 1
    %p212 = por %p210, %p211
    %p214 = scmp.ne.s32.totalorder %s199, %s213
    %p215 = scmp.eq.s32.totalorder %s21, 0
    %p216 = por %p214, %p215
    %s217 = ssub.s32 %s15, %s22
    %p218 = scmp.eq.s32.totalorder %s217, 0
    %s220 = sadd.s32 %s219, 1
    %s221 = scalar_select %p218, %s219, %s220
    %p224 = pneg %p218
    %p225 = scmp.eq.s32.totalorder %s15, 1
    %p226 = por %p224, %p225
    %p227 = scmp.ne.s32.totalorder %s219, %s222
    %p228 = scmp.eq.s32.totalorder %s15, 0
    %p229 = por %p227, %p228
    %p230 = scmp.ne.s32.totalorder %s219, %s222
    %p231 = scmp.eq.s32.totalorder %s20, 1
    %p232 = por %p230, %p231
    %p233 = scmp.ne.s32.totalorder %s222, %s223
    %p234 = scmp.eq.s32.totalorder %s20, 0
    %p235 = por %p233, %p234
    %p236 = scmp.ne.s32.totalorder %s222, %s223
    %p237 = scmp.eq.s32.totalorder %s21, 1
    %p238 = por %p236, %p237
    %p240 = scmp.ne.s32.totalorder %s223, %s239
    %p241 = scmp.eq.s32.totalorder %s21, 0
    %p242 = por %p240, %p241
    %p243 = scmp.le.s32.totalorder 1, %s15
    %p244 = scmp.lt.s32.totalorder %s15, 3
    %p245 = pnand %p243, %p244
    %p246 = pneg %p245
    // Predicated region
    $region9: #{gated_residual_network.1} parent=5 // pred_check
      _
    $region10: #{gated_residual_network.1} parent=5 // pred_check_branch
      %248 = sbr.rel (%p245) target = $region12
    $region11: #{gated_residual_network.1} parent=5 // pred_region
      %s249 = ssub.s32 %s15, 1
      // Predicated region
      $region13: #{gated_residual_network.1} parent=11 // pred_check
        %p250 = pneg %p62
      $region14: #{gated_residual_network.1} parent=11 // pred_check_branch
        %252 = sbr.rel (%p250) target = $region16
      $region15: #{gated_residual_network.1} parent=11 // pred_region
        _
      $region16: #{gated_residual_network.1} parent=11 // pred_fallthru
        _
      // Predicated region
      $region17: #{gated_residual_network.1} parent=11 // pred_check
        %p253 = pneg %p83
      $region18: #{gated_residual_network.1} parent=11 // pred_check_branch
        %255 = sbr.rel (%p253) target = $region20
      $region19: #{gated_residual_network.1} parent=11 // pred_region
        _
      $region20: #{gated_residual_network.1} parent=11 // pred_fallthru
        _
      // Predicated region
      $region21: #{gated_residual_network.1} parent=11 // pred_check
        %p256 = pneg %p104
      $region22: #{gated_residual_network.1} parent=11 // pred_check_branch
        %258 = sbr.rel (%p256) target = $region24
      $region23: #{gated_residual_network.1} parent=11 // pred_region
        _
      $region24: #{gated_residual_network.1} parent=11 // pred_fallthru
        _
      // Predicated region
      $region25: #{gated_residual_network.1} parent=11 // pred_check
        %p259 = pneg %p125
      $region26: #{gated_residual_network.1} parent=11 // pred_check_branch
        %261 = sbr.rel (%p259) target = $region28
      $region27: #{gated_residual_network.1} parent=11 // pred_region
        _
      $region28: #{gated_residual_network.1} parent=11 // pred_fallthru
        _
      // Predicated region
      $region29: #{gated_residual_network.1} parent=11 // pred_check
        %p262 = pneg %p146
      $region30: #{gated_residual_network.1} parent=11 // pred_check_branch
        %264 = sbr.rel (%p262) target = $region32
      $region31: #{gated_residual_network.1} parent=11 // pred_region
        _
      $region32: #{gated_residual_network.1} parent=11 // pred_fallthru
        _
      // Predicated region
      $region33: #{gated_residual_network.1} parent=11 // pred_check
        %p265 = pneg %p167
      $region34: #{gated_residual_network.1} parent=11 // pred_check_branch
        %267 = sbr.rel (%p265) target = $region36
      $region35: #{gated_residual_network.1} parent=11 // pred_region
        _
      $region36: #{gated_residual_network.1} parent=11 // pred_fallthru
        _
      // Predicated region
      $region37: #{gated_residual_network.1} parent=11 // pred_check
        %p268 = pneg %p188
      $region38: #{gated_residual_network.1} parent=11 // pred_check_branch
        %270 = sbr.rel (%p268) target = $region40
      $region39: #{gated_residual_network.1} parent=11 // pred_region
        _
      $region40: #{gated_residual_network.1} parent=11 // pred_fallthru
        _
      // Predicated region
      $region41: #{gated_residual_network.1} parent=11 // pred_check
        %p271 = pneg %p209
      $region42: #{gated_residual_network.1} parent=11 // pred_check_branch
        %273 = sbr.rel (%p271) target = $region44
      $region43: #{gated_residual_network.1} parent=11 // pred_region
        _
      $region44: #{gated_residual_network.1} parent=11 // pred_fallthru
        _
    $region12: #{gated_residual_network.1} parent=5 // pred_fallthru
      _
    %p274 = scmp.lt.s32.totalorder %s15, 2
    // Predicated region
    $region45: #{gated_residual_network.1} parent=5 // pred_check
      %p275 = pneg %p274
    $region46: #{gated_residual_network.1} parent=5 // pred_check_branch
      %277 = sbr.rel (%p275) target = $region48
    $region47: #{gated_residual_network.1} parent=5 // pred_region
      // Predicated region
      $region49: #{gated_residual_network.1} parent=47 // pred_check
        %p278 = pneg %p35
      $region50: #{gated_residual_network.1} parent=47 // pred_check_branch
        %280 = sbr.rel (%p278) target = $region52
      $region51: #{gated_residual_network.1} parent=47 // pred_region
        %p281 = scmp.lt.s32.totalorder %s15, 1
        %s282 = scalar_select %p281, %s15, 1
        %s283 = smul.addr %s282, 8
        %s284 = scalar_lea.vmem %s0, %s283
      $region52: #{gated_residual_network.1} parent=47 // pred_fallthru
        _
    $region48: #{gated_residual_network.1} parent=5 // pred_fallthru
      _
    %p285 = scmp.le.s32.totalorder 1, %s15
    %p286 = scmp.lt.s32.totalorder %s15, 3
    %p287 = pnand %p285, %p286
    %p288 = pneg %p287
    // Predicated region
    $region53: #{gated_residual_network.1} parent=5 // pred_check
      _
    $region54: #{gated_residual_network.1} parent=5 // pred_check_branch
      %290 = sbr.rel (%p287) target = $region56
    $region55: #{gated_residual_network.1} parent=5 // pred_region
      %s291 = ssub.s32 %s15, 1
      %p292 = scmp.lt.s32.totalorder %s20, 1
      %s293 = scalar_select %p292, %s20, 1
      %s294 = smul.addr %s293, 8
      %s295 = scalar_lea.vmem %s0, %s294
      %p296 = pneg %p41
      %p297 = pneg %p38
      %p298 = pneg %p62
      %p299 = pneg %p59
      %p300 = pneg %p83
      %p301 = pneg %p80
      %p302 = pneg %p104
      %p303 = pneg %p101
      %p304 = pneg %p125
      %p305 = pneg %p122
      %p306 = pneg %p146
      %p307 = pneg %p143
      %p308 = pneg %p167
      %p309 = pneg %p164
      %p310 = pneg %p188
      %p311 = pneg %p185
      %p312 = pneg %p209
      %p313 = pneg %p206
      %p314 = pneg %p235
      %p315 = pneg %p232
      %p316 = scmp.lt.s32.totalorder %s20, 1
      %s317 = scalar_select %p316, %s20, 1
      %s318 = smul.addr %s317, 8
      %s319 = scalar_lea.vmem %s9, %s318
      %p320 = scmp.lt.s32.totalorder %s20, 1
      %s321 = scalar_select %p320, %s20, 1
      %s322 = smul.addr %s321, 8
      %s323 = scalar_lea.vmem %s0, %s322
      %p324 = scmp.lt.s32.totalorder %s20, 1
      %s325 = scalar_select %p324, %s20, 1
      %s326 = smul.addr %s325, 8
      %s327 = scalar_lea.vmem %s9, %s326
      %v328 = vld [vmem:[%s323] sm:$0xff]
      %v329 = vld [vmem:[%s1] sm:$0xff]
      %v330 = vld [vmem:[%s1 + $0x8] sm:$0xff]
      %v331 = vld [vmem:[%s1 + $0x10] sm:$0xff]
      %v332 = vld [vmem:[%s1 + $0x18] sm:$0xff]
      %v333 = vld [vmem:[%s1 + $0x20] sm:$0xff]
      %v334 = vld [vmem:[%s1 + $0x28] sm:$0xff]
      %v335 = vld [vmem:[%s2] sm:$0x3]
      %v337 = vperm.slane %v335, 0
      %v338 = vperm.slane %v335, 1
      %vm341 = vcmask 195584
      %v343 = vsel %vm341, %v328, 0
      %345 = vmatpush.msra.mxu0 0.0
      %346 = vmatpush.msra.mxu0 0.0
      %347 = vmatpush.msra.mxu0 0.0
      %348 = vmatpush.msra.mxu0 0.0
      %349 = vmatpush.msra.mxu0 0.0
      %350 = vmatpush.msra.mxu0 0.0
      %351 = vmatpush.msra.mxu0 0.0
      %352 = vmatpush.msra.mxu0 0.0
      %353 = vmatpush.msra.mxu0 0.0
      %354 = vmatpush.msra.mxu0 0.0
      %355 = vmatpush.msra.mxu0 0.0
      %356 = vmatpush.msra.mxu0 0.0
      %357 = vmatpush.msra.mxu0 0.0
      %358 = vmatpush.msra.mxu0 %v333
      %359 = vmatpush.msra.mxu0 %v331
      %360 = vmatpush.msra.mxu0 %v329
      %361 = vmatmul.f32.gmra.mxu0 %v343
      %v362 = vpop.f32.mrf.mxu0
      %v363 = vadd.f32 %v337, %v362
      %364 = vdwg.mxu0
      %365 = vmatpush.msra.mxu0 0.0
      %366 = vmatpush.msra.mxu0 0.0
      %367 = vmatpush.msra.mxu0 0.0
      %368 = vmatpush.msra.mxu0 0.0
      %369 = vmatpush.msra.mxu0 0.0
      %370 = vmatpush.msra.mxu0 0.0
      %371 = vmatpush.msra.mxu0 0.0
      %372 = vmatpush.msra.mxu0 0.0
      %373 = vmatpush.msra.mxu0 0.0
      %374 = vmatpush.msra.mxu0 0.0
      %375 = vmatpush.msra.mxu0 0.0
      %376 = vmatpush.msra.mxu0 0.0
      %377 = vmatpush.msra.mxu0 0.0
      %378 = vmatpush.msra.mxu0 %v334
      %379 = vmatpush.msra.mxu0 %v332
      %380 = vmatpush.msra.mxu0 %v330
      %381 = vmatmul.f32.gmra.mxu0 %v343
      %v382 = vpop.f32.mrf.mxu0
      %v383 = vadd.f32 %v338, %v382
      %384 = vdwg.mxu0
      %vm385 = vcmp.gt.f32.partialorder %v363, 0.0
      %v386 = vmin.f32 %v363, 0.0
      %v387 = vmul.f32 %v386, 1.442695
      %v388 = vpow.pop %v387
      %v389 = vsub.f32 %v388, 1.0
      %v390 = vsel %vm385, %v363, %v389
      %v391 = vld [vmem:[%s3] sm:$0xff]
      %v392 = vld [vmem:[%s3 + $0x8] sm:$0xff]
      %v393 = vld [vmem:[%s3 + $0x10] sm:$0xff]
      %v394 = vld [vmem:[%s3 + $0x18] sm:$0xff]
      %v395 = vld [vmem:[%s3 + $0x20] sm:$0xff]
      %v396 = vld [vmem:[%s3 + $0x28] sm:$0xff]
      %v397 = vld [vmem:[%s3 + $0x30] sm:$0xff]
      %v398 = vld [vmem:[%s3 + $0x38] sm:$0xff]
      %v399 = vld [vmem:[%s3 + $0x40] sm:$0xff]
      %v400 = vld [vmem:[%s3 + $0x48] sm:$0xff]
      %v401 = vld [vmem:[%s3 + $0x50] sm:$0xff]
      %v402 = vld [vmem:[%s3 + $0x58] sm:$0xff]
      %v403 = vld [vmem:[%s3 + $0x60] sm:$0xff]
      %v404 = vld [vmem:[%s3 + $0x68] sm:$0xff]
      %v405 = vld [vmem:[%s3 + $0x70] sm:$0xff]
      %v406 = vld [vmem:[%s3 + $0x78] sm:$0xff]
      %v407 = vld [vmem:[%s4] sm:$0x1]
      %v409 = vperm.slane %v407, 0
      %411 = vmatpush.msra.mxu0 %v406
      %412 = vmatpush.msra.mxu0 %v405
      %413 = vmatpush.msra.mxu0 %v404
      %414 = vmatpush.msra.mxu0 %v403
      %415 = vmatpush.msra.mxu0 %v402
      %416 = vmatpush.msra.mxu0 %v401
      %417 = vmatpush.msra.mxu0 %v400
      %418 = vmatpush.msra.mxu0 %v399
      %419 = vmatpush.msra.mxu0 %v398
      %420 = vmatpush.msra.mxu0 %v397
      %421 = vmatpush.msra.mxu0 %v396
      %422 = vmatpush.msra.mxu0 %v395
      %423 = vmatpush.msra.mxu0 %v394
      %424 = vmatpush.msra.mxu0 %v393
      %425 = vmatpush.msra.mxu0 %v392
      %426 = vmatpush.msra.mxu0 %v391
      %427 = vmatmul.f32.gmra.mxu0 %v390
      %v428 = vpop.f32.mrf.mxu0
      %v429 = vadd.f32 %v409, %v428
      %430 = vdwg.mxu0
      %v431 = vld [vmem:[%s5] sm:$0xff]
      %v432 = vld [vmem:[%s5 + $0x8] sm:$0xff]
      %v433 = vld [vmem:[%s5 + $0x10] sm:$0xff]
      %v434 = vld [vmem:[%s5 + $0x18] sm:$0xff]
      %v435 = vld [vmem:[%s5 + $0x20] sm:$0xff]
      %v436 = vld [vmem:[%s5 + $0x28] sm:$0xff]
      %v437 = vld [vmem:[%s5 + $0x30] sm:$0xff]
      %v438 = vld [vmem:[%s5 + $0x38] sm:$0xff]
      %v439 = vld [vmem:[%s5 + $0x40] sm:$0xff]
      %v440 = vld [vmem:[%s5 + $0x48] sm:$0xff]
      %v441 = vld [vmem:[%s5 + $0x50] sm:$0xff]
      %v442 = vld [vmem:[%s5 + $0x58] sm:$0xff]
      %v443 = vld [vmem:[%s5 + $0x60] sm:$0xff]
      %v444 = vld [vmem:[%s5 + $0x68] sm:$0xff]
      %v445 = vld [vmem:[%s5 + $0x70] sm:$0xff]
      %v446 = vld [vmem:[%s5 + $0x78] sm:$0xff]
      %v447 = vld [vmem:[%s5 + $0x80] sm:$0xff]
      %v448 = vld [vmem:[%s5 + $0x88] sm:$0xff]
      %v449 = vld [vmem:[%s5 + $0x90] sm:$0xff]
      %v450 = vld [vmem:[%s5 + $0x98] sm:$0xff]
      %v451 = vld [vmem:[%s5 + $0xa0] sm:$0xff]
      %v452 = vld [vmem:[%s5 + $0xa8] sm:$0xff]
      %v453 = vld [vmem:[%s5 + $0xb0] sm:$0xff]
      %v454 = vld [vmem:[%s5 + $0xb8] sm:$0xff]
      %v455 = vld [vmem:[%s5 + $0xc0] sm:$0xff]
      %v456 = vld [vmem:[%s5 + $0xc8] sm:$0xff]
      %v457 = vld [vmem:[%s5 + $0xd0] sm:$0xff]
      %v458 = vld [vmem:[%s5 + $0xd8] sm:$0xff]
      %v459 = vld [vmem:[%s5 + $0xe0] sm:$0xff]
      %v460 = vld [vmem:[%s5 + $0xe8] sm:$0xff]
      %v461 = vld [vmem:[%s5 + $0xf0] sm:$0xff]
      %v462 = vld [vmem:[%s5 + $0xf8] sm:$0xff]
      %v463 = vld [vmem:[%s6] sm:$0x3]
      %v465 = vperm.slane %v463, 0
      %v466 = vperm.slane %v463, 1
      %469 = vmatpush.msra.mxu0 %v461
      %470 = vmatpush.msra.mxu0 %v459
      %471 = vmatpush.msra.mxu0 %v457
      %472 = vmatpush.msra.mxu0 %v455
      %473 = vmatpush.msra.mxu0 %v453
      %474 = vmatpush.msra.mxu0 %v451
      %475 = vmatpush.msra.mxu0 %v449
      %476 = vmatpush.msra.mxu0 %v447
      %477 = vmatpush.msra.mxu0 %v445
      %478 = vmatpush.msra.mxu0 %v443
      %479 = vmatpush.msra.mxu0 %v441
      %480 = vmatpush.msra.mxu0 %v439
      %481 = vmatpush.msra.mxu0 %v437
      %482 = vmatpush.msra.mxu0 %v435
      %483 = vmatpush.msra.mxu0 %v433
      %484 = vmatpush.msra.mxu0 %v431
      %485 = vmatmul.f32.gmra.mxu0 %v429
      %v486 = vpop.f32.mrf.mxu0
      %v487 = vadd.f32 %v465, %v486
      %488 = vdwg.mxu0
      %489 = vmatpush.msra.mxu0 %v462
      %490 = vmatpush.msra.mxu0 %v460
      %491 = vmatpush.msra.mxu0 %v458
      %492 = vmatpush.msra.mxu0 %v456
      %493 = vmatpush.msra.mxu0 %v454
      %494 = vmatpush.msra.mxu0 %v452
      %495 = vmatpush.msra.mxu0 %v450
      %496 = vmatpush.msra.mxu0 %v448
      %497 = vmatpush.msra.mxu0 %v446
      %498 = vmatpush.msra.mxu0 %v444
      %499 = vmatpush.msra.mxu0 %v442
      %500 = vmatpush.msra.mxu0 %v440
      %501 = vmatpush.msra.mxu0 %v438
      %502 = vmatpush.msra.mxu0 %v436
      %503 = vmatpush.msra.mxu0 %v434
      %504 = vmatpush.msra.mxu0 %v432
      %505 = vmatmul.f32.gmra.mxu0 %v429
      %v506 = vpop.f32.mrf.mxu0
      %v507 = vadd.f32 %v466, %v506
      %508 = vdwg.mxu0
      %v509 = vxor.u32 %v507, 2147483648
      %v510 = vmul.f32 %v509, 1.442695
      %v511 = vpow.pop %v510
      %v512 = vadd.f32 %v511, 1.0
      %v513 = vrcp.pop %v512
      %v514 = vmul.f32 %v512, %v513
      %v515 = vsub.f32 1.0, %v514
      %v516 = vmul.f32 %v513, %v515
      %v517 = vadd.f32 %v513, %v516
      %vm518 = vweird.f32 %v512
      %vm519 = vweird.f32 %v513
      %vm520 = vmor %vm518, %vm519
      %v521 = vsel %vm520, %v513, %v517
      %v522 = vand.u32 2147483647, %v512
      %vm523 = vcmp.eq.f32.partialorder %v522, 8.507059e+37
      %v524 = vand.u32 %v512, 2147483648
      %v525 = vor.u32 1.1754944e-38, %v524
      %v526 = vsel %vm523, %v525, %v521
      %v527 = vmul.f32 1.0, %v526
      %v528 = vmul.f32 %v527, %v487
      %v529 = vadd.f32 %v528, %v383
      %v530 = vlaneseq
      %v531 = vand.u32 %v530, 127
      %vm532 = vcmp.lt.s32.totalorder %v531, 24
      %v533 = vsel %vm532, %v529, 0.0
      %534 = vadd.xlane.f32.xlu0 %v533
      %v535 = vpop.xlane.xlu0 %534
      %v536 = vmul.f32 %v535, 0.041666668
      %v537 = vsub.f32 %v529, %v536
      %v538 = vsel %vm532, %v537, 0.0
      %v539 = vmul.f32 %v538, %v538
      %540 = vadd.xlane.f32.xlu0 %v539
      %v541 = vpop.xlane.xlu0 %540
      %v542 = vmul.f32 %v541, 0.041666668
      %v543 = vadd.f32 %v542, 1e-05
      %v544 = vrsqrt.pop %v543
      %v545 = vmul.f32 %v544, %v543
      %v546 = vmul.f32 %v545, %v544
      %v547 = vmul.f32 0.5, %v546
      %v548 = vsub.f32 1.5, %v547
      %v549 = vmul.f32 %v544, %v548
      %vm550 = vweird.f32 %v543
      %vm551 = vweird.f32 %v544
      %vm552 = vmor %vm550, %vm551
      %v553 = vsel %vm552, %v544, %v549
      %v554 = vmul.f32 %v538, %v553
      %v555 = vld [vmem:[%s7] sm:$0x1]
      %v557 = vperm.slane %v555, 0
      %v559 = vmul.f32 %v554, %v557
      %v560 = vld [vmem:[%s8] sm:$0x1]
      %v562 = vperm.slane %v560, 0
      %v564 = vadd.f32 %v559, %v562
      %565 = vst [vmem:[%s327] sm:$0xff] %v564
      %p566 = scmp.lt.s32.totalorder %s20, 1
      %s567 = scalar_select %p566, %s20, 1
      %s568 = smul.addr %s567, 8
      %s569 = scalar_lea.vmem %s9, %s568
      // Predicated region
      $region57: #{gated_residual_network.1} parent=55 // pred_check
        %p570 = pneg %p232
      $region58: #{gated_residual_network.1} parent=55 // pred_check_branch
        %572 = sbr.rel (%p570) target = $region60
      $region59: #{gated_residual_network.1} parent=55 // pred_region
        _
      $region60: #{gated_residual_network.1} parent=55 // pred_fallthru
        _
    $region56: #{gated_residual_network.1} parent=5 // pred_fallthru
      _
    %p573 = scmp.le.s32.totalorder 2, %s15
    // Predicated region
    $region61: #{gated_residual_network.1} parent=5 // pred_check
      %p574 = pneg %p573
    $region62: #{gated_residual_network.1} parent=5 // pred_check_branch
      %576 = sbr.rel (%p574) target = $region64
    $region63: #{gated_residual_network.1} parent=5 // pred_region
      %s577 = ssub.s32 %s15, 2
      // Predicated region
      $region65: #{gated_residual_network.1} parent=63 // pred_check
        %p578 = pneg %p238
      $region66: #{gated_residual_network.1} parent=63 // pred_check_branch
        %580 = sbr.rel (%p578) target = $region68
      $region67: #{gated_residual_network.1} parent=63 // pred_region
        %p581 = scmp.lt.s32.totalorder %s21, 1
        %s582 = scalar_select %p581, %s21, 1
        %s583 = smul.addr %s582, 8
        %s584 = scalar_lea.vmem %s9, %s583
      $region68: #{gated_residual_network.1} parent=63 // pred_fallthru
        _
    $region64: #{gated_residual_network.1} parent=5 // pred_fallthru
      _
  $region6: #{gated_residual_network.1} parent=0 // loop_footer
    %s19 = sadd.s32 1, %s15
  $region7: #{gated_residual_network.1} parent=0 // loop_footer_branch
    %14 = sbr.rel target = $region3
  $region8: #{gated_residual_network.1} parent=0 // loop_exit
    _

</llo_original>
